<compile_context>
chip_gen: v5e
topology: v5e:2x2
jax: 0.10.0
libtpu: 0.0.40
codegen_flags: <defaults>
</compile_context>

<pallas_src>
import functools

import jax
import jax.numpy as jnp
from jax.experimental import pallas as pl
from jax.experimental.pallas import tpu as pltpu


def _fused_mlp_kernel(*refs, n_layers: int, eps: float):
    """refs = (x_ref, [w,b,(gamma,beta)]*layers..., out_ref).

    Hidden layers carry (w, b, gamma, beta); the final layer only (w, b).
    The whole network is evaluated on the current batch tile; only the final
    activation is written back.
    """
    x_ref = refs[0]
    out_ref = refs[-1]
    p_refs = refs[1:-1]

    x = x_ref[...]                      # (TB, D_in), already f32
    idx = 0
    for i in range(n_layers):
        is_hidden = i < n_layers - 1
        w = p_refs[idx][...]            # (D_in_i, D_out_i)
        b = p_refs[idx + 1][...]        # (1, D_out_i)
        idx += 2
        # Linear: MXU matmul with f32 accumulation.
        y = jnp.dot(x, w, preferred_element_type=jnp.float32) + b
        if is_hidden:
            g = p_refs[idx][...]        # (1, D_out_i)
            beta = p_refs[idx + 1][...]
            idx += 2
            # LayerNorm over the feature axis (matches nn.LayerNorm(D_out_i)).
            mean = jnp.mean(y, axis=-1, keepdims=True)
            centered = y - mean
            var = jnp.mean(centered * centered, axis=-1, keepdims=True)
            y = centered * jax.lax.rsqrt(var + eps)
            y = y * g + beta
            y = jnp.maximum(y, 0.0)     # ReLU
        x = y
    out_ref[...] = x.astype(out_ref.dtype)


def c_encoder_forward(x, params, *, tb: int = 512, eps: float = 1e-5):
    """Fused C_Encoder forward.

    params: list of dicts; every layer has 'w' (D_in, D_out) and 'b' (D_out,);
            hidden layers additionally have 'gamma'/'beta' for LayerNorm.
    tb:     batch tile (rows per grid step) used when B > tb.
    """
    B, D_in = x.shape
    n_layers = len(params)
    D_out = params[-1]["w"].shape[1]

    # Batch tiling: full-array block for small batches, TB-row tiles otherwise.
    if B <= tb:
        TB = B
        B_pad = B
    else:
        TB = tb                               # multiple of 8 (sublane aligned)
        B_pad = pl.cdiv(B, TB) * TB
    if B_pad != B:
        x = jnp.pad(x, ((0, B_pad - B), (0, 0)))
    grid = (B_pad // TB,)

    # Flatten parameters and build BlockSpecs. Weights/biases use a constant
    # index_map -> loaded into VMEM once and kept resident across grid steps.
    const_idx = lambda i: (0, 0)
    flat_params = []
    in_specs = [pl.BlockSpec((TB, D_in), lambda i: (i, 0))]
    for li, p in enumerate(params):
        d_o = p["w"].shape[1]
        flat_params.append(p["w"])
        in_specs.append(pl.BlockSpec(p["w"].shape, const_idx))
        flat_params.append(p["b"].reshape(1, d_o))
        in_specs.append(pl.BlockSpec((1, d_o), const_idx))
        if li < n_layers - 1:
            flat_params.append(p["gamma"].reshape(1, d_o))
            in_specs.append(pl.BlockSpec((1, d_o), const_idx))
            flat_params.append(p["beta"].reshape(1, d_o))
            in_specs.append(pl.BlockSpec((1, d_o), const_idx))

    kernel = functools.partial(_fused_mlp_kernel, n_layers=n_layers, eps=eps)
    out = pl.pallas_call(
        kernel,
        out_shape=jax.ShapeDtypeStruct((B_pad, D_out), jnp.float32),
        grid=grid,
        in_specs=in_specs,
        out_specs=pl.BlockSpec((TB, D_out), lambda i: (i, 0)),
        compiler_params=pltpu.CompilerParams(
            # Batch tiles are independent -> safe to shard across TensorCores.
            dimension_semantics=("parallel",),
        ),
    )(x, *flat_params)

    return out[:B] if B_pad != B else out


def init_params(key, mlp_layers):
    """Deterministic init mirroring nn.Linear defaults (U(+/-1/sqrt(fan_in)))
    and nn.LayerNorm defaults (gamma=1, beta=0)."""
    params = []
    n = len(mlp_layers) - 1
    for i in range(n):
        d_in, d_out = mlp_layers[i], mlp_layers[i + 1]
        key, kw, kb = jax.random.split(key, 3)
        bound = 1.0 / jnp.sqrt(float(d_in))
        w = jax.random.uniform(kw, (d_in, d_out), jnp.float32, -bound, bound)
        b = jax.random.uniform(kb, (d_out,), jnp.float32, -bound, bound)
        p = {"w": w, "b": b}
        if i < n - 1:
            p["gamma"] = jnp.ones((d_out,), jnp.float32)
            p["beta"] = jnp.zeros((d_out,), jnp.float32)
        params.append(p)
    return params


def _reference(x, params):
    """Pure-JAX reference matching the PyTorch forward."""
    n = len(params)
    for i, p in enumerate(params):
        x = x @ p["w"] + p["b"]
        if i < n - 1:
            mean = jnp.mean(x, axis=-1, keepdims=True)
            var = jnp.mean((x - mean) ** 2, axis=-1, keepdims=True)
            x = (x - mean) / jnp.sqrt(var + 1e-5)
            x = x * p["gamma"] + p["beta"]
            x = jnp.maximum(x, 0.0)
    return x


if __name__ == "__main__":
    key = jax.random.PRNGKey(0)
    mlp_layers = [16, 32, 32, 8]   # condition encoder layer sizes

    key, kx = jax.random.split(key)
    params = init_params(key, mlp_layers)

    # Case 1: small batch -> single grid step (full-array batch block).
    x_small = jax.random.normal(kx, (4, mlp_layers[0]), jnp.float32)
    out_small = jax.block_until_ready(c_encoder_forward(x_small, params))
    ref_small = _reference(x_small, params)
    assert out_small.shape == (4, mlp_layers[-1])
    assert jnp.allclose(out_small, ref_small, atol=1e-4, rtol=1e-4), \
        "small-batch mismatch vs reference"

    # Case 2: larger batch -> tiled grid (>1 step), with batch padding.
    key, kx2 = jax.random.split(key)
    x_big = jax.random.normal(kx2, (1000, mlp_layers[0]), jnp.float32)
    out_big = jax.block_until_ready(c_encoder_forward(x_big, params, tb=256))
    ref_big = _reference(x_big, params)
    assert out_big.shape == (1000, mlp_layers[-1])
    assert jnp.allclose(out_big, ref_big, atol=1e-4, rtol=1e-4), \
        "tiled-batch mismatch vs reference"

    print("KERNEL_OK")
</pallas_src>

<mosaic_0001>
module attributes {stable_mosaic.version = 11 : i64} {
  func.func @_fused_mlp_kernel(%arg0: i32, %arg1: memref<4x16xf32, #tpu.memory_space<vmem>>, %arg2: memref<16x32xf32, #tpu.memory_space<vmem>>, %arg3: memref<1x32xf32, #tpu.memory_space<vmem>>, %arg4: memref<1x32xf32, #tpu.memory_space<vmem>>, %arg5: memref<1x32xf32, #tpu.memory_space<vmem>>, %arg6: memref<32x32xf32, #tpu.memory_space<vmem>>, %arg7: memref<1x32xf32, #tpu.memory_space<vmem>>, %arg8: memref<1x32xf32, #tpu.memory_space<vmem>>, %arg9: memref<1x32xf32, #tpu.memory_space<vmem>>, %arg10: memref<32x8xf32, #tpu.memory_space<vmem>>, %arg11: memref<1x8xf32, #tpu.memory_space<vmem>>, %arg12: memref<4x8xf32, #tpu.memory_space<vmem>>) attributes {dimension_semantics = [#tpu.dimension_semantics<parallel>], iteration_bounds = array<i64: 1>, scalar_prefetch = 0 : i64, scratch_operands = 0 : i64, tpu.core_type = #tpu.core_type<tc>, window_params = [{transform_indices = @transform_0, window_bounds = array<i64: 4, 16>}, {pipeline_mode = #tpu.pipeline_mode<synchronous>, transform_indices = @transform_1, window_bounds = array<i64: 16, 32>}, {pipeline_mode = #tpu.pipeline_mode<synchronous>, transform_indices = @transform_2, window_bounds = array<i64: 1, 32>}, {pipeline_mode = #tpu.pipeline_mode<synchronous>, transform_indices = @transform_3, window_bounds = array<i64: 1, 32>}, {pipeline_mode = #tpu.pipeline_mode<synchronous>, transform_indices = @transform_4, window_bounds = array<i64: 1, 32>}, {pipeline_mode = #tpu.pipeline_mode<synchronous>, transform_indices = @transform_5, window_bounds = array<i64: 32, 32>}, {pipeline_mode = #tpu.pipeline_mode<synchronous>, transform_indices = @transform_6, window_bounds = array<i64: 1, 32>}, {pipeline_mode = #tpu.pipeline_mode<synchronous>, transform_indices = @transform_7, window_bounds = array<i64: 1, 32>}, {pipeline_mode = #tpu.pipeline_mode<synchronous>, transform_indices = @transform_8, window_bounds = array<i64: 1, 32>}, {pipeline_mode = #tpu.pipeline_mode<synchronous>, transform_indices = @transform_9, window_bounds = array<i64: 32, 8>}, {pipeline_mode = #tpu.pipeline_mode<synchronous>, transform_indices = @transform_10, window_bounds = array<i64: 1, 8>}, {transform_indices = @transform_11, window_bounds = array<i64: 4, 8>}]} {
    %c0 = arith.constant 0 : index
    %c0_0 = arith.constant 0 : index
    %0 = vector.load %arg1[%c0, %c0_0] : memref<4x16xf32, #tpu.memory_space<vmem>>, vector<4x16xf32>
    %c0_1 = arith.constant 0 : index
    %c0_2 = arith.constant 0 : index
    %1 = vector.load %arg2[%c0_1, %c0_2] : memref<16x32xf32, #tpu.memory_space<vmem>>, vector<16x32xf32>
    %c0_3 = arith.constant 0 : index
    %c0_4 = arith.constant 0 : index
    %2 = vector.load %arg3[%c0_3, %c0_4] : memref<1x32xf32, #tpu.memory_space<vmem>>, vector<1x32xf32>
    %cst = arith.constant dense<0.000000e+00> : vector<4x32xf32>
    %3 = tpu.matmul %0, %1, %cst {dimension_numbers = #tpu.dot_dimension_numbers<[1], [0], [0], [1], [0, 0, 1, 1], [], []>} : vector<4x16xf32>, vector<16x32xf32>, vector<4x32xf32> -> vector<4x32xf32>
    %4 = vector.broadcast %2 : vector<1x32xf32> to vector<4x32xf32>
    %5 = arith.addf %3, %4 : vector<4x32xf32>
    %c0_5 = arith.constant 0 : index
    %c0_6 = arith.constant 0 : index
    %6 = vector.load %arg4[%c0_5, %c0_6] : memref<1x32xf32, #tpu.memory_space<vmem>>, vector<1x32xf32>
    %c0_7 = arith.constant 0 : index
    %c0_8 = arith.constant 0 : index
    %7 = vector.load %arg5[%c0_7, %c0_8] : memref<1x32xf32, #tpu.memory_space<vmem>>, vector<1x32xf32>
    %cst_9 = arith.constant dense<0.000000e+00> : vector<4xf32>
    %8 = vector.multi_reduction <add>, %5, %cst_9 [1] : vector<4x32xf32> to vector<4xf32>
    %9 = vector.shape_cast %8 : vector<4xf32> to vector<4x1xf32>
    %cst_10 = arith.constant 3.200000e+01 : f32
    %10 = vector.broadcast %cst_10 : f32 to vector<4x1xf32>
    %11 = arith.divf %9, %10 : vector<4x1xf32>
    %12 = vector.broadcast %11 : vector<4x1xf32> to vector<4x32xf32>
    %13 = arith.subf %5, %12 : vector<4x32xf32>
    %14 = arith.mulf %13, %13 : vector<4x32xf32>
    %cst_11 = arith.constant dense<0.000000e+00> : vector<4xf32>
    %15 = vector.multi_reduction <add>, %14, %cst_11 [1] : vector<4x32xf32> to vector<4xf32>
    %16 = vector.shape_cast %15 : vector<4xf32> to vector<4x1xf32>
    %cst_12 = arith.constant 3.200000e+01 : f32
    %17 = vector.broadcast %cst_12 : f32 to vector<4x1xf32>
    %18 = arith.divf %16, %17 : vector<4x1xf32>
    %cst_13 = arith.constant 9.99999974E-6 : f32
    %19 = vector.broadcast %cst_13 : f32 to vector<4x1xf32>
    %20 = arith.addf %18, %19 : vector<4x1xf32>
    %21 = math.rsqrt %20 : vector<4x1xf32>
    %22 = vector.broadcast %21 : vector<4x1xf32> to vector<4x32xf32>
    %23 = arith.mulf %13, %22 : vector<4x32xf32>
    %24 = vector.broadcast %6 : vector<1x32xf32> to vector<4x32xf32>
    %25 = arith.mulf %23, %24 : vector<4x32xf32>
    %26 = vector.broadcast %7 : vector<1x32xf32> to vector<4x32xf32>
    %27 = arith.addf %25, %26 : vector<4x32xf32>
    %cst_14 = arith.constant 0.000000e+00 : f32
    %28 = vector.broadcast %cst_14 : f32 to vector<4x32xf32>
    %29 = arith.maximumf %27, %28 : vector<4x32xf32>
    %c0_15 = arith.constant 0 : index
    %c0_16 = arith.constant 0 : index
    %30 = vector.load %arg6[%c0_15, %c0_16] : memref<32x32xf32, #tpu.memory_space<vmem>>, vector<32x32xf32>
    %c0_17 = arith.constant 0 : index
    %c0_18 = arith.constant 0 : index
    %31 = vector.load %arg7[%c0_17, %c0_18] : memref<1x32xf32, #tpu.memory_space<vmem>>, vector<1x32xf32>
    %cst_19 = arith.constant dense<0.000000e+00> : vector<4x32xf32>
    %32 = tpu.matmul %29, %30, %cst_19 {dimension_numbers = #tpu.dot_dimension_numbers<[1], [0], [0], [1], [0, 0, 1, 1], [], []>} : vector<4x32xf32>, vector<32x32xf32>, vector<4x32xf32> -> vector<4x32xf32>
    %33 = vector.broadcast %31 : vector<1x32xf32> to vector<4x32xf32>
    %34 = arith.addf %32, %33 : vector<4x32xf32>
    %c0_20 = arith.constant 0 : index
    %c0_21 = arith.constant 0 : index
    %35 = vector.load %arg8[%c0_20, %c0_21] : memref<1x32xf32, #tpu.memory_space<vmem>>, vector<1x32xf32>
    %c0_22 = arith.constant 0 : index
    %c0_23 = arith.constant 0 : index
    %36 = vector.load %arg9[%c0_22, %c0_23] : memref<1x32xf32, #tpu.memory_space<vmem>>, vector<1x32xf32>
    %cst_24 = arith.constant dense<0.000000e+00> : vector<4xf32>
    %37 = vector.multi_reduction <add>, %34, %cst_24 [1] : vector<4x32xf32> to vector<4xf32>
    %38 = vector.shape_cast %37 : vector<4xf32> to vector<4x1xf32>
    %cst_25 = arith.constant 3.200000e+01 : f32
    %39 = vector.broadcast %cst_25 : f32 to vector<4x1xf32>
    %40 = arith.divf %38, %39 : vector<4x1xf32>
    %41 = vector.broadcast %40 : vector<4x1xf32> to vector<4x32xf32>
    %42 = arith.subf %34, %41 : vector<4x32xf32>
    %43 = arith.mulf %42, %42 : vector<4x32xf32>
    %cst_26 = arith.constant dense<0.000000e+00> : vector<4xf32>
    %44 = vector.multi_reduction <add>, %43, %cst_26 [1] : vector<4x32xf32> to vector<4xf32>
    %45 = vector.shape_cast %44 : vector<4xf32> to vector<4x1xf32>
    %cst_27 = arith.constant 3.200000e+01 : f32
    %46 = vector.broadcast %cst_27 : f32 to vector<4x1xf32>
    %47 = arith.divf %45, %46 : vector<4x1xf32>
    %cst_28 = arith.constant 9.99999974E-6 : f32
    %48 = vector.broadcast %cst_28 : f32 to vector<4x1xf32>
    %49 = arith.addf %47, %48 : vector<4x1xf32>
    %50 = math.rsqrt %49 : vector<4x1xf32>
    %51 = vector.broadcast %50 : vector<4x1xf32> to vector<4x32xf32>
    %52 = arith.mulf %42, %51 : vector<4x32xf32>
    %53 = vector.broadcast %35 : vector<1x32xf32> to vector<4x32xf32>
    %54 = arith.mulf %52, %53 : vector<4x32xf32>
    %55 = vector.broadcast %36 : vector<1x32xf32> to vector<4x32xf32>
    %56 = arith.addf %54, %55 : vector<4x32xf32>
    %cst_29 = arith.constant 0.000000e+00 : f32
    %57 = vector.broadcast %cst_29 : f32 to vector<4x32xf32>
    %58 = arith.maximumf %56, %57 : vector<4x32xf32>
    %c0_30 = arith.constant 0 : index
    %c0_31 = arith.constant 0 : index
    %59 = vector.load %arg10[%c0_30, %c0_31] : memref<32x8xf32, #tpu.memory_space<vmem>>, vector<32x8xf32>
    %c0_32 = arith.constant 0 : index
    %c0_33 = arith.constant 0 : index
    %60 = vector.load %arg11[%c0_32, %c0_33] : memref<1x8xf32, #tpu.memory_space<vmem>>, vector<1x8xf32>
    %cst_34 = arith.constant dense<0.000000e+00> : vector<4x8xf32>
    %61 = tpu.matmul %58, %59, %cst_34 {dimension_numbers = #tpu.dot_dimension_numbers<[1], [0], [0], [1], [0, 0, 1, 1], [], []>} : vector<4x32xf32>, vector<32x8xf32>, vector<4x8xf32> -> vector<4x8xf32>
    %62 = vector.broadcast %60 : vector<1x8xf32> to vector<4x8xf32>
    %63 = arith.addf %61, %62 : vector<4x8xf32>
    %c0_35 = arith.constant 0 : index
    %c0_36 = arith.constant 0 : index
    %64 = vector.load %arg12[%c0_35, %c0_36] : memref<4x8xf32, #tpu.memory_space<vmem>>, vector<4x8xf32>
    tpu.vector_store %arg12[%c0_35, %c0_36], %63 {strides = array<i32>} : memref<4x8xf32, #tpu.memory_space<vmem>>, vector<4x8xf32>,
    return
  }
  func.func @transform_0(%arg0: i32) -> (i32, i32) {
    %c0_i32 = arith.constant 0 : i32
    %c0_i32_0 = arith.constant 0 : i32
    return %arg0, %c0_i32 : i32, i32
  }
  func.func @transform_1(%arg0: i32) -> (i32, i32) {
    %c0_i32 = arith.constant 0 : i32
    %c0_i32_0 = arith.constant 0 : i32
    %c0_i32_1 = arith.constant 0 : i32
    return %c0_i32, %c0_i32_0 : i32, i32
  }
  func.func @transform_2(%arg0: i32) -> (i32, i32) {
    %c0_i32 = arith.constant 0 : i32
    %c0_i32_0 = arith.constant 0 : i32
    %c0_i32_1 = arith.constant 0 : i32
    return %c0_i32, %c0_i32_0 : i32, i32
  }
  func.func @transform_3(%arg0: i32) -> (i32, i32) {
    %c0_i32 = arith.constant 0 : i32
    %c0_i32_0 = arith.constant 0 : i32
    %c0_i32_1 = arith.constant 0 : i32
    return %c0_i32, %c0_i32_0 : i32, i32
  }
  func.func @transform_4(%arg0: i32) -> (i32, i32) {
    %c0_i32 = arith.constant 0 : i32
    %c0_i32_0 = arith.constant 0 : i32
    %c0_i32_1 = arith.constant 0 : i32
    return %c0_i32, %c0_i32_0 : i32, i32
  }
  func.func @transform_5(%arg0: i32) -> (i32, i32) {
    %c0_i32 = arith.constant 0 : i32
    %c0_i32_0 = arith.constant 0 : i32
    %c0_i32_1 = arith.constant 0 : i32
    return %c0_i32, %c0_i32_0 : i32, i32
  }
  func.func @transform_6(%arg0: i32) -> (i32, i32) {
    %c0_i32 = arith.constant 0 : i32
    %c0_i32_0 = arith.constant 0 : i32
    %c0_i32_1 = arith.constant 0 : i32
    return %c0_i32, %c0_i32_0 : i32, i32
  }
  func.func @transform_7(%arg0: i32) -> (i32, i32) {
    %c0_i32 = arith.constant 0 : i32
    %c0_i32_0 = arith.constant 0 : i32
    %c0_i32_1 = arith.constant 0 : i32
    return %c0_i32, %c0_i32_0 : i32, i32
  }
  func.func @transform_8(%arg0: i32) -> (i32, i32) {
    %c0_i32 = arith.constant 0 : i32
    %c0_i32_0 = arith.constant 0 : i32
    %c0_i32_1 = arith.constant 0 : i32
    return %c0_i32, %c0_i32_0 : i32, i32
  }
  func.func @transform_9(%arg0: i32) -> (i32, i32) {
    %c0_i32 = arith.constant 0 : i32
    %c0_i32_0 = arith.constant 0 : i32
    %c0_i32_1 = arith.constant 0 : i32
    return %c0_i32, %c0_i32_0 : i32, i32
  }
  func.func @transform_10(%arg0: i32) -> (i32, i32) {
    %c0_i32 = arith.constant 0 : i32
    %c0_i32_0 = arith.constant 0 : i32
    %c0_i32_1 = arith.constant 0 : i32
    return %c0_i32, %c0_i32_0 : i32, i32
  }
  func.func @transform_11(%arg0: i32) -> (i32, i32) {
    %c0_i32 = arith.constant 0 : i32
    %c0_i32_0 = arith.constant 0 : i32
    return %arg0, %c0_i32 : i32, i32
  }
}

</mosaic_0001>

<llo_original>
// kernel: tpu_custom_call.1
$region0: #{tpu_custom_call.1}
  #allocation0 [shape = 'u32[]', space=smem, size = 0x4, offset = 0x4, fixed_abs, tag = 'smem constant byte address 0x4 - core index']
  #allocation1 [shape = 'u32[72,128]{1,0:T(1,128)}', space=vmem, size = 0x9000, scoped, tag = 'internal scratch']
  %s0 = inlined_call_operand.vmem [shape: f32[4,16], index: 0, kind: input, shape index: {}]
  %s1 = inlined_call_operand.hbm [shape: f32[16,32], index: 1, kind: input, shape index: {}]
  %s2 = inlined_call_operand.vmem [shape: f32[1,32], index: 2, kind: input, shape index: {}]
  %s3 = inlined_call_operand.vmem [shape: f32[1,32], index: 3, kind: input, shape index: {}]
  %s4 = inlined_call_operand.vmem [shape: f32[1,32], index: 4, kind: input, shape index: {}]
  %s5 = inlined_call_operand.vmem [shape: f32[32,32], index: 5, kind: input, shape index: {}]
  %s6 = inlined_call_operand.vmem [shape: f32[1,32], index: 6, kind: input, shape index: {}]
  %s7 = inlined_call_operand.hbm [shape: f32[1,32], index: 7, kind: input, shape index: {}]
  %s8 = inlined_call_operand.hbm [shape: f32[1,32], index: 8, kind: input, shape index: {}]
  %s9 = inlined_call_operand.vmem [shape: f32[32,8], index: 9, kind: input, shape index: {}]
  %s10 = inlined_call_operand.vmem [shape: f32[1,8], index: 10, kind: input, shape index: {}]
  %s11 = inlined_call_operand.hbm [shape: f32[4,8], index: 11, kind: output, shape index: {}]
  %s12 = sld [smem:[#allocation0]]
  $region66: #{tpu_custom_call.1} parent=0
    _
  %s14 = ssub.s32 1, %s12
  %s15 = scalar_select 0, %s14, %s12
  $region1: #{tpu_custom_call.1} parent=0
    #allocation2 [shape = 'u8[8192]{0}', space=vmem, size = 0x2000, scoped, tag = 'input window, operand 1, single buffered']
    #allocation3 [shape = 's32[1]{0}', space=sflag, size = 0x4, scoped, tag = 'scoped memory for tpu_custom_call.1']
    #allocation4 [shape = 's32[1]{0}', space=sflag, size = 0x4, scoped, tag = 'scoped memory for tpu_custom_call.1']
    #allocation5 [shape = 'u8[512]{0}', space=vmem, size = 0x400, scoped, tag = 'input window, operand 7, single buffered']
    #allocation6 [shape = 's32[1]{0}', space=sflag, size = 0x4, scoped, tag = 'scoped memory for tpu_custom_call.1']
    #allocation7 [shape = 'u8[512]{0}', space=vmem, size = 0x400, scoped, tag = 'input window, operand 8, single buffered']
    #allocation8 [shape = 'u8[2048]{0}', space=vmem, size = 0x800, scoped, tag = 'output window, operand 0, single buffered']
    %16 = vsyncpa [#allocation3], 0
    %17 = vsyncpa [#allocation6], 0
    %18 = vsyncpa [#allocation4], 0
    // Predicated region
    $region2: #{tpu_custom_call.1} parent=1 // pred_check
      _
    $region3: #{tpu_custom_call.1} parent=1 // pred_check_branch
      %20 = sbr.rel (0) target = $region5
    $region4: #{tpu_custom_call.1} parent=1 // pred_region
      _
    $region5: #{tpu_custom_call.1} parent=1 // pred_fallthru
      _
    // Predicated region
    $region6: #{tpu_custom_call.1} parent=1 // pred_check
      _
    $region7: #{tpu_custom_call.1} parent=1 // pred_check_branch
      %22 = sbr.rel (0) target = $region9
    $region8: #{tpu_custom_call.1} parent=1 // pred_region
      %24 = vsyncadd [#allocation3], 0
      %s25 = sshll.u32 %s1, 4
      %s26 = int_to_ptr.hbm [resolvable:$true] %s25
      %s27 = sshll.u32 [#allocation2], 4
      %s28 = int_to_ptr.vmem [resolvable:$true] %s27
      %33 = dma.hbm_to_vmem [thread:$0]  %s26, 256, %s28, [#allocation3], 128, 128, 8
    $region9: #{tpu_custom_call.1} parent=1 // pred_fallthru
      _
    // Predicated region
    $region10: #{tpu_custom_call.1} parent=1 // pred_check
      _
    $region11: #{tpu_custom_call.1} parent=1 // pred_check_branch
      %35 = sbr.rel (0) target = $region13
    $region12: #{tpu_custom_call.1} parent=1 // pred_region
      _
    $region13: #{tpu_custom_call.1} parent=1 // pred_fallthru
      _
    // Predicated region
    $region14: #{tpu_custom_call.1} parent=1 // pred_check
      _
    $region15: #{tpu_custom_call.1} parent=1 // pred_check_branch
      %37 = sbr.rel (0) target = $region17
    $region16: #{tpu_custom_call.1} parent=1 // pred_region
      _
    $region17: #{tpu_custom_call.1} parent=1 // pred_fallthru
      _
    // Predicated region
    $region18: #{tpu_custom_call.1} parent=1 // pred_check
      _
    $region19: #{tpu_custom_call.1} parent=1 // pred_check_branch
      %39 = sbr.rel (0) target = $region21
    $region20: #{tpu_custom_call.1} parent=1 // pred_region
      _
    $region21: #{tpu_custom_call.1} parent=1 // pred_fallthru
      _
    // Predicated region
    $region22: #{tpu_custom_call.1} parent=1 // pred_check
      _
    $region23: #{tpu_custom_call.1} parent=1 // pred_check_branch
      %41 = sbr.rel (0) target = $region25
    $region24: #{tpu_custom_call.1} parent=1 // pred_region
      _
    $region25: #{tpu_custom_call.1} parent=1 // pred_fallthru
      _
    // Predicated region
    $region26: #{tpu_custom_call.1} parent=1 // pred_check
      _
    $region27: #{tpu_custom_call.1} parent=1 // pred_check_branch
      %43 = sbr.rel (0) target = $region29
    $region28: #{tpu_custom_call.1} parent=1 // pred_region
      _
    $region29: #{tpu_custom_call.1} parent=1 // pred_fallthru
      _
    // Predicated region
    $region30: #{tpu_custom_call.1} parent=1 // pred_check
      _
    $region31: #{tpu_custom_call.1} parent=1 // pred_check_branch
      %45 = sbr.rel (0) target = $region33
    $region32: #{tpu_custom_call.1} parent=1 // pred_region
      %47 = vsyncadd [#allocation6], 0
      %s49 = sshll.u32 %s7, 4
      %s50 = int_to_ptr.hbm [resolvable:$true] %s49
      %s51 = sshll.u32 [#allocation5], 4
      %s52 = int_to_ptr.vmem [resolvable:$true] %s51
      %54 = dma.hbm_to_vmem [thread:$0]  %s50, 16, %s52, [#allocation6]
    $region33: #{tpu_custom_call.1} parent=1 // pred_fallthru
      _
    // Predicated region
    $region34: #{tpu_custom_call.1} parent=1 // pred_check
      _
    $region35: #{tpu_custom_call.1} parent=1 // pred_check_branch
      %56 = sbr.rel (0) target = $region37
    $region36: #{tpu_custom_call.1} parent=1 // pred_region
      %58 = vsyncadd [#allocation6], 0
      %s60 = sshll.u32 %s8, 4
      %s61 = int_to_ptr.hbm [resolvable:$true] %s60
      %s62 = sshll.u32 [#allocation7], 4
      %s63 = int_to_ptr.vmem [resolvable:$true] %s62
      %65 = dma.hbm_to_vmem [thread:$0]  %s61, 16, %s63, [#allocation6]
    $region37: #{tpu_custom_call.1} parent=1 // pred_fallthru
      _
    // Predicated region
    $region38: #{tpu_custom_call.1} parent=1 // pred_check
      _
    $region39: #{tpu_custom_call.1} parent=1 // pred_check_branch
      %67 = sbr.rel (0) target = $region41
    $region40: #{tpu_custom_call.1} parent=1 // pred_region
      _
    $region41: #{tpu_custom_call.1} parent=1 // pred_fallthru
      _
    // Predicated region
    $region42: #{tpu_custom_call.1} parent=1 // pred_check
      _
    $region43: #{tpu_custom_call.1} parent=1 // pred_check_branch
      %69 = sbr.rel (0) target = $region45
    $region44: #{tpu_custom_call.1} parent=1 // pred_region
      _
    $region45: #{tpu_custom_call.1} parent=1 // pred_fallthru
      _
    // Predicated region
    $region46: #{tpu_custom_call.1} parent=1 // pred_check
      _
    $region47: #{tpu_custom_call.1} parent=1 // pred_check_branch
      %71 = sbr.rel (0) target = $region49
    $region48: #{tpu_custom_call.1} parent=1 // pred_region
      %73 = dma.done [#allocation3], 256
    $region49: #{tpu_custom_call.1} parent=1 // pred_fallthru
      _
    // Predicated region
    $region50: #{tpu_custom_call.1} parent=1 // pred_check
      _
    $region51: #{tpu_custom_call.1} parent=1 // pred_check_branch
      %75 = sbr.rel (0) target = $region53
    $region52: #{tpu_custom_call.1} parent=1 // pred_region
      %77 = dma.done [#allocation6], 16
    $region53: #{tpu_custom_call.1} parent=1 // pred_fallthru
      _
    // Predicated region
    $region54: #{tpu_custom_call.1} parent=1 // pred_check
      _
    $region55: #{tpu_custom_call.1} parent=1 // pred_check_branch
      %79 = sbr.rel (0) target = $region57
    $region56: #{tpu_custom_call.1} parent=1 // pred_region
      %81 = dma.done [#allocation6], 16
    $region57: #{tpu_custom_call.1} parent=1 // pred_fallthru
      _
    %v82 = vld [vmem:[%s0] sm:$0xf]
    %v83 = vld [vmem:[#allocation2] sm:$0xff]
    %v84 = vld [vmem:[#allocation2 + $0x8] sm:$0xff]
    %v85 = vld [vmem:[%s2] sm:$0x1]
    %v87 = vperm.slane %v85, 0
    %vm89 = vcmask 130048
    %v91 = vsel %vm89, %v82, 0
    %93 = vmatpush.msra.mxu0 0.0
    %94 = vmatpush.msra.mxu0 0.0
    %95 = vmatpush.msra.mxu0 0.0
    %96 = vmatpush.msra.mxu0 0.0
    %97 = vmatpush.msra.mxu0 0.0
    %98 = vmatpush.msra.mxu0 0.0
    %99 = vmatpush.msra.mxu0 0.0
    %100 = vmatpush.msra.mxu0 0.0
    %101 = vmatpush.msra.mxu0 0.0
    %102 = vmatpush.msra.mxu0 0.0
    %103 = vmatpush.msra.mxu0 0.0
    %104 = vmatpush.msra.mxu0 0.0
    %105 = vmatpush.msra.mxu0 0.0
    %106 = vmatpush.msra.mxu0 0.0
    %107 = vmatpush.msra.mxu0 %v84
    %108 = vmatpush.msra.mxu0 %v83
    %109 = vmatmul.f32.gmra.mxu0 %v91
    %v110 = vpop.f32.mrf.mxu0
    %v111 = vadd.f32 %v87, %v110
    %112 = vdwg.mxu0
    %v113 = vld [vmem:[%s3] sm:$0x1]
    %v114 = vld [vmem:[%s4] sm:$0x1]
    %vm115 = vcmask 257024
    %v116 = vsel %vm115, %v111, 0.0
    %117 = vadd.xlane.f32.xlu0 %v116
    %v118 = vpop.xlane.xlu0 %117
    %v119 = vrcp.pop 32.0
    %v120 = vmul.f32 32.0, %v119
    %v121 = vsub.f32 1.0, %v120
    %v122 = vmul.f32 %v119, %v121
    %v123 = vadd.f32 %v119, %v122
    %vm124 = vweird.f32 %v119
    %v125 = vsel %vm124, %v119, %v123
    %v126 = vmul.f32 %v118, %v125
    %v127 = vsub.f32 %v111, %v126
    %v128 = vmul.f32 %v127, %v127
    %v129 = vsel %vm115, %v128, 0.0
    %130 = vadd.xlane.f32.xlu0 %v129
    %v131 = vpop.xlane.xlu0 %130
    %v132 = vmul.f32 %v131, %v125
    %v133 = vadd.f32 %v132, 1e-05
    %v134 = vrsqrt.pop %v133
    %v135 = vmul.f32 %v134, %v133
    %v136 = vmul.f32 %v135, %v134
    %v137 = vmul.f32 0.5, %v136
    %v138 = vsub.f32 1.5, %v137
    %v139 = vmul.f32 %v134, %v138
    %vm140 = vweird.f32 %v133
    %vm141 = vweird.f32 %v134
    %vm142 = vmor %vm140, %vm141
    %v143 = vsel %vm142, %v134, %v139
    %v144 = vmul.f32 %v127, %v143
    %v146 = vperm.slane %v113, 0
    %v148 = vmul.f32 %v144, %v146
    %v150 = vperm.slane %v114, 0
    %v152 = vadd.f32 %v148, %v150
    %v153 = vmax.f32 %v152, 0.0
    %v154 = vld [vmem:[%s5] sm:$0xff]
    %v155 = vld [vmem:[%s5 + $0x8] sm:$0xff]
    %v156 = vld [vmem:[%s5 + $0x10] sm:$0xff]
    %v157 = vld [vmem:[%s5 + $0x18] sm:$0xff]
    %v158 = vld [vmem:[%s6] sm:$0x1]
    %v160 = vperm.slane %v158, 0
    %vm162 = vcmask 261120
    %v164 = vsel %vm162, %v153, 0
    %166 = vmatpush.msra.mxu0 0.0
    %167 = vmatpush.msra.mxu0 0.0
    %168 = vmatpush.msra.mxu0 0.0
    %169 = vmatpush.msra.mxu0 0.0
    %170 = vmatpush.msra.mxu0 0.0
    %171 = vmatpush.msra.mxu0 0.0
    %172 = vmatpush.msra.mxu0 0.0
    %173 = vmatpush.msra.mxu0 0.0
    %174 = vmatpush.msra.mxu0 0.0
    %175 = vmatpush.msra.mxu0 0.0
    %176 = vmatpush.msra.mxu0 0.0
    %177 = vmatpush.msra.mxu0 0.0
    %178 = vmatpush.msra.mxu0 %v157
    %179 = vmatpush.msra.mxu0 %v156
    %180 = vmatpush.msra.mxu0 %v155
    %181 = vmatpush.msra.mxu0 %v154
    %182 = vmatmul.f32.gmra.mxu0 %v164
    %v183 = vpop.f32.mrf.mxu0
    %v184 = vadd.f32 %v160, %v183
    %185 = vdwg.mxu0
    %v186 = vld [vmem:[#allocation5] sm:$0x1]
    %v187 = vld [vmem:[#allocation7] sm:$0x1]
    %v188 = vsel %vm115, %v184, 0.0
    %189 = vadd.xlane.f32.xlu0 %v188
    %v190 = vpop.xlane.xlu0 %189
    %v191 = vmul.f32 %v190, %v125
    %v192 = vsub.f32 %v184, %v191
    %v193 = vmul.f32 %v192, %v192
    %v194 = vsel %vm115, %v193, 0.0
    %195 = vadd.xlane.f32.xlu0 %v194
    %v196 = vpop.xlane.xlu0 %195
    %v197 = vmul.f32 %v196, %v125
    %v198 = vadd.f32 %v197, 1e-05
    %v199 = vrsqrt.pop %v198
    %v200 = vmul.f32 %v199, %v198
    %v201 = vmul.f32 %v200, %v199
    %v202 = vmul.f32 0.5, %v201
    %v203 = vsub.f32 1.5, %v202
    %v204 = vmul.f32 %v199, %v203
    %vm205 = vweird.f32 %v198
    %vm206 = vweird.f32 %v199
    %vm207 = vmor %vm205, %vm206
    %v208 = vsel %vm207, %v199, %v204
    %v209 = vmul.f32 %v192, %v208
    %v211 = vperm.slane %v186, 0
    %v213 = vmul.f32 %v209, %v211
    %v215 = vperm.slane %v187, 0
    %v217 = vadd.f32 %v213, %v215
    %v218 = vmax.f32 %v217, 0.0
    %v219 = vld [vmem:[%s9] sm:$0xff]
    %v220 = vld [vmem:[%s9 + $0x8] sm:$0xff]
    %v221 = vld [vmem:[%s9 + $0x10] sm:$0xff]
    %v222 = vld [vmem:[%s9 + $0x18] sm:$0xff]
    %v223 = vld [vmem:[%s10] sm:$0x1]
    %v225 = vperm.slane %v223, 0
    %v228 = vsel %vm162, %v218, 0
    %230 = vmatpush.msra.mxu0 0.0
    %231 = vmatpush.msra.mxu0 0.0
    %232 = vmatpush.msra.mxu0 0.0
    %233 = vmatpush.msra.mxu0 0.0
    %234 = vmatpush.msra.mxu0 0.0
    %235 = vmatpush.msra.mxu0 0.0
    %236 = vmatpush.msra.mxu0 0.0
    %237 = vmatpush.msra.mxu0 0.0
    %238 = vmatpush.msra.mxu0 0.0
    %239 = vmatpush.msra.mxu0 0.0
    %240 = vmatpush.msra.mxu0 0.0
    %241 = vmatpush.msra.mxu0 0.0
    %242 = vmatpush.msra.mxu0 %v222
    %243 = vmatpush.msra.mxu0 %v221
    %244 = vmatpush.msra.mxu0 %v220
    %245 = vmatpush.msra.mxu0 %v219
    %246 = vmatmul.f32.gmra.mxu0 %v228
    %v247 = vpop.f32.mrf.mxu0
    %v248 = vadd.f32 %v225, %v247
    %249 = vdwg.mxu0
    %vm250 = vcmask 60416
    %251 = vst.msk [vmem:[#allocation8] sm:$0xf] %vm250, %v248
    // Predicated region
    $region58: #{tpu_custom_call.1} parent=1 // pred_check
      _
    $region59: #{tpu_custom_call.1} parent=1 // pred_check_branch
      %253 = sbr.rel (0) target = $region61
    $region60: #{tpu_custom_call.1} parent=1 // pred_region
      %255 = vsyncadd [#allocation4], 0
      %s257 = sshll.u32 [#allocation8], 4
      %s258 = int_to_ptr.vmem [resolvable:$true] %s257
      %s259 = sshll.u32 %s11, 4
      %s260 = int_to_ptr.hbm [resolvable:$true] %s259
      %262 = dma.vmem_to_hbm [thread:$0]  %s258, 64, %s260, [#allocation4]
    $region61: #{tpu_custom_call.1} parent=1 // pred_fallthru
      _
    // Predicated region
    $region62: #{tpu_custom_call.1} parent=1 // pred_check
      _
    $region63: #{tpu_custom_call.1} parent=1 // pred_check_branch
      %264 = sbr.rel (0) target = $region65
    $region64: #{tpu_custom_call.1} parent=1 // pred_region
      %266 = dma.done [#allocation4], 64
    $region65: #{tpu_custom_call.1} parent=1 // pred_fallthru
      _
    %267 = vsyncpa [#allocation3], 1
    %268 = vsyncpa [#allocation6], 1
    %269 = vsyncpa [#allocation4], 1

</llo_original>
